<compile_context>
chip_gen: v7x
topology: tpu7x:2x2x1
jax: 0.10.0
libtpu: 0.0.40
codegen_flags: <defaults>
</compile_context>

<pallas_src>
import functools

import jax
import jax.numpy as jnp
from jax import lax
from jax.experimental import pallas as pl
from jax.experimental.pallas import tpu as pltpu


def _conv4x4s2_kernel(x_ref, w_ref, b_ref, o_ref, *, cout, shifts):
    """One batch element per grid step.

    x_ref : (1, 4*Cin, Lp)   space-to-depth'd, zero-padded input (bf16),
                             lane index = a*Wa + b on the padded block grid.
    w_ref : (4*Cout, 4*Cin)  the four 2x2 taps stacked along rows (bf16).
    b_ref : (Cout, 1)        bias (f32).
    o_ref : (1, Cout, Lp)    output on the padded block grid (f32); valid
                             entries live at lane i*Wa + j, i < Ho, j < Wo.
    """
    x = x_ref[0]                                      # (4*Cin, Lp) bf16
    # ---- single GEMM for all 16 original conv taps (K = 4*Cin) ----
    y = jnp.dot(w_ref[...], x,
                preferred_element_type=jnp.float32)   # (4*Cout, Lp) f32
    lp = y.shape[-1]

    # ---- combine the 4 (2x2) taps: lane rotate by -shift, then add ----
    acc = y[0:cout, :]                                # tap (u,v)=(0,0), shift 0
    for t, s in enumerate(shifts):
        if t == 0:
            continue
        blk = y[t * cout:(t + 1) * cout, :]
        acc = acc + pltpu.roll(blk, shift=lp - s, axis=1)   # == jnp.roll(blk, -s)

    o_ref[0] = acc + b_ref[...]                       # bias broadcast over lanes


@functools.partial(jax.jit,
                   static_argnames=("padding", "stride", "spectral_normed"))
def conv2d_forward(x, w, b, *, padding, stride=2, spectral_normed=False):
    """x: (N, Cin, H, W) f32; w: (Cout, Cin, 4, 4) OIHW; b: (Cout,).
    Returns (N, Cout, Ho, Wo) f32, matching nn.Conv2d(kernel=4, stride=2, pad)."""
    N, Cin, H, W = x.shape
    Cout, Cin_w, KH, KW = w.shape
    assert Cin_w == Cin and KH == 4 and KW == 4 and stride == 2, \
        "kernel specialised to the module defaults: kernel_size=4, stride=2"

    if spectral_normed:
        # torch.nn.utils.spectral_norm divides the weight by its largest
        # singular value (power-iteration estimate).  Torch keeps persistent
        # u/v buffers; here we run a few fresh power iterations instead.
        wm = w.reshape(Cout, -1).astype(jnp.float32)
        v = jnp.full((wm.shape[1],), 1.0 / jnp.sqrt(wm.shape[1]), jnp.float32)
        for _ in range(5):
            u = wm @ v
            u = u / (jnp.linalg.norm(u) + 1e-12)
            v = wm.T @ u
            v = v / (jnp.linalg.norm(v) + 1e-12)
        sigma = u @ (wm @ v)
        w = (w / sigma).astype(w.dtype)

    Ho = (H + 2 * padding - KH) // stride + 1
    Wo = (W + 2 * padding - KW) // stride + 1
    Hp = stride * (Ho - 1) + KH            # padded rows actually used (even)
    Wp = stride * (Wo - 1) + KW
    Ha, Wa = Hp // 2, Wp // 2              # space-to-depth block grid
    L = Ha * Wa
    Lp = ((L + 127) // 128) * 128          # lane-align the spatial axis
    K = 4 * Cin

    # --- single wrapper-side glue pass: pad + space-to-depth (bf16) ---------
    xb = x.astype(jnp.bfloat16)
    xb = jnp.pad(xb, ((0, 0), (0, 0),
                      (padding, max(Hp - H - padding, 0)),
                      (padding, max(Wp - W - padding, 0))))[:, :, :Hp, :Wp]
    xs = xb.reshape(N, Cin, Ha, 2, Wa, 2)
    xs = jnp.transpose(xs, (0, 1, 3, 5, 2, 4))        # (N, Cin, p, q, Ha, Wa)
    xmat = xs.reshape(N, K, L)                        # m = ci*4 + p*2 + q
    xmat = jnp.pad(xmat, ((0, 0), (0, 0), (0, Lp - L)))

    # weights OIHW -> (4*Cout, 4*Cin); tap t = u*2+v stacked along rows.
    w6 = w.astype(jnp.float32).reshape(Cout, Cin, 2, 2, 2, 2)   # (co,ci,u,p,v,q)
    w6 = jnp.transpose(w6, (2, 4, 0, 1, 3, 5))                  # (u,v,co,ci,p,q)
    w_all = w6.reshape(4 * Cout, K).astype(jnp.bfloat16)
    b2 = b.reshape(Cout, 1).astype(jnp.float32)

    kernel = functools.partial(_conv4x4s2_kernel, cout=Cout,
                               shifts=(0, 1, Wa, Wa + 1))
    out_flat = pl.pallas_call(
        kernel,
        out_shape=jax.ShapeDtypeStruct((N, Cout, Lp), jnp.float32),
        grid=(N,),
        in_specs=[
            pl.BlockSpec((1, K, Lp), lambda n: (n, 0, 0)),
            pl.BlockSpec((4 * Cout, K), lambda n: (0, 0)),
            pl.BlockSpec((Cout, 1), lambda n: (0, 0)),
        ],
        out_specs=pl.BlockSpec((1, Cout, Lp), lambda n: (n, 0, 0)),
        compiler_params=pltpu.CompilerParams(
            dimension_semantics=("parallel",)),
    )(xmat, w_all, b2)

    # drop the lane padding and the 1-block halo of the padded output grid.
    out = out_flat[:, :, :L].reshape(N, Cout, Ha, Wa)[:, :, :Ho, :Wo]
    return out


def _ref_forward(x, w, b, *, padding, stride=2):
    """Pure-JAX reference reproducing nn.Conv2d (NCHW / OIHW)."""
    y = lax.conv_general_dilated(
        x, w, window_strides=(stride, stride),
        padding=[(padding, padding), (padding, padding)],
        dimension_numbers=("NCHW", "OIHW", "NCHW"))
    return y + b.reshape(1, -1, 1, 1)


if __name__ == "__main__":
    N, Cin, Cout, H, W = 2, 4, 8, 16, 16
    padding = 1

    key = jax.random.PRNGKey(0)
    k_w, k_b, k_x = jax.random.split(key, 3)

    # mirror the module init: weight ~ N(0, 0.02^2); bias = Conv2d default.
    w = 0.02 * jax.random.normal(k_w, (Cout, Cin, 4, 4), jnp.float32)
    bound = 1.0 / (Cin * 4 * 4) ** 0.5
    b = jax.random.uniform(k_b, (Cout,), jnp.float32, -bound, bound)
    x = jax.random.normal(k_x, (N, Cin, H, W), jnp.float32)

    out = conv2d_forward(x, w, b, padding=padding)
    out = jax.block_until_ready(out)
    assert out.shape == (N, Cout, H // 2, W // 2), out.shape

    # reference on the same bf16-rounded operands (kernel uses bf16 MXU inputs
    # with f32 accumulation), so the comparison stays tight.
    xr = x.astype(jnp.bfloat16).astype(jnp.float32)
    wr = w.astype(jnp.bfloat16).astype(jnp.float32)
    ref = _ref_forward(xr, wr, b, padding=padding)

    err = float(jnp.max(jnp.abs(out - ref)))
    assert jnp.allclose(out, ref, atol=1e-4, rtol=1e-4), err

    print("KERNEL_OK")
</pallas_src>

<mosaic_0001>
module attributes {stable_mosaic.version = 11 : i64} {
  func.func @_conv4x4s2_kernel(%arg0: i32, %arg1: memref<1x16x128xbf16, #tpu.memory_space<vmem>>, %arg2: memref<32x16xbf16, #tpu.memory_space<vmem>>, %arg3: memref<8x1xf32, #tpu.memory_space<vmem>>, %arg4: memref<1x8x128xf32, #tpu.memory_space<vmem>>) attributes {dimension_semantics = [#tpu.dimension_semantics<parallel>], iteration_bounds = array<i64: 2>, scalar_prefetch = 0 : i64, scratch_operands = 0 : i64, tpu.core_type = #tpu.core_type<tc>, window_params = [{transform_indices = @transform_0, window_bounds = array<i64: 1, 16, 128>}, {pipeline_mode = #tpu.pipeline_mode<synchronous>, transform_indices = @transform_1, window_bounds = array<i64: 32, 16>}, {pipeline_mode = #tpu.pipeline_mode<synchronous>, transform_indices = @transform_2, window_bounds = array<i64: 8, 1>}, {transform_indices = @transform_3, window_bounds = array<i64: 1, 8, 128>}]} {
    %c0 = arith.constant 0 : index
    %c0_0 = arith.constant 0 : index
    %c0_1 = arith.constant 0 : index
    %0 = vector.load %arg1[%c0, %c0_0, %c0_1] : memref<1x16x128xbf16, #tpu.memory_space<vmem>>, vector<1x16x128xbf16>
    %1 = vector.shape_cast %0 : vector<1x16x128xbf16> to vector<16x128xbf16>
    %c0_2 = arith.constant 0 : index
    %c0_3 = arith.constant 0 : index
    %2 = vector.load %arg2[%c0_2, %c0_3] : memref<32x16xbf16, #tpu.memory_space<vmem>>, vector<32x16xbf16>
    %cst = arith.constant dense<0.000000e+00> : vector<32x128xf32>
    %3 = tpu.matmul %2, %1, %cst {dimension_numbers = #tpu.dot_dimension_numbers<[1], [0], [0], [1], [0, 0, 1, 1], [], []>} : vector<32x16xbf16>, vector<16x128xbf16>, vector<32x128xf32> -> vector<32x128xf32>
    %4 = vector.extract_strided_slice %3 {offsets = [0, 0], sizes = [8, 128], strides = [1, 1]} : vector<32x128xf32> to vector<8x128xf32>
    %5 = vector.extract_strided_slice %3 {offsets = [8, 0], sizes = [8, 128], strides = [1, 1]} : vector<32x128xf32> to vector<8x128xf32>
    %c127_i32 = arith.constant 127 : i32
    %6 = tpu.dynamic_rotate %5 by %c127_i32 dim 1 : vector<8x128xf32>, i32 -> vector<8x128xf32>
    %7 = arith.addf %4, %6 : vector<8x128xf32>
    %8 = vector.extract_strided_slice %3 {offsets = [16, 0], sizes = [8, 128], strides = [1, 1]} : vector<32x128xf32> to vector<8x128xf32>
    %c119_i32 = arith.constant 119 : i32
    %9 = tpu.dynamic_rotate %8 by %c119_i32 dim 1 : vector<8x128xf32>, i32 -> vector<8x128xf32>
    %10 = arith.addf %7, %9 : vector<8x128xf32>
    %11 = vector.extract_strided_slice %3 {offsets = [24, 0], sizes = [8, 128], strides = [1, 1]} : vector<32x128xf32> to vector<8x128xf32>
    %c118_i32 = arith.constant 118 : i32
    %12 = tpu.dynamic_rotate %11 by %c118_i32 dim 1 : vector<8x128xf32>, i32 -> vector<8x128xf32>
    %13 = arith.addf %10, %12 : vector<8x128xf32>
    %c0_4 = arith.constant 0 : index
    %c0_5 = arith.constant 0 : index
    %14 = vector.load %arg3[%c0_4, %c0_5] : memref<8x1xf32, #tpu.memory_space<vmem>>, vector<8x1xf32>
    %15 = vector.broadcast %14 : vector<8x1xf32> to vector<8x128xf32>
    %16 = arith.addf %13, %15 : vector<8x128xf32>
    %c0_6 = arith.constant 0 : index
    %c0_7 = arith.constant 0 : index
    %c0_8 = arith.constant 0 : index
    %17 = vector.load %arg4[%c0_6, %c0_7, %c0_8] : memref<1x8x128xf32, #tpu.memory_space<vmem>>, vector<1x8x128xf32>
    %18 = vector.shape_cast %17 : vector<1x8x128xf32> to vector<8x128xf32>
    %19 = vector.shape_cast %16 : vector<8x128xf32> to vector<1x8x128xf32>
    tpu.vector_store %arg4[%c0_6, %c0_7, %c0_8], %19 {strides = array<i32>} : memref<1x8x128xf32, #tpu.memory_space<vmem>>, vector<1x8x128xf32>,
    return
  }
  func.func @transform_0(%arg0: i32) -> (i32, i32, i32) {
    %c0_i32 = arith.constant 0 : i32
    %c0_i32_0 = arith.constant 0 : i32
    %c0_i32_1 = arith.constant 0 : i32
    return %arg0, %c0_i32, %c0_i32_0 : i32, i32, i32
  }
  func.func @transform_1(%arg0: i32) -> (i32, i32) {
    %c0_i32 = arith.constant 0 : i32
    %c0_i32_0 = arith.constant 0 : i32
    %c0_i32_1 = arith.constant 0 : i32
    return %c0_i32, %c0_i32_0 : i32, i32
  }
  func.func @transform_2(%arg0: i32) -> (i32, i32) {
    %c0_i32 = arith.constant 0 : i32
    %c0_i32_0 = arith.constant 0 : i32
    %c0_i32_1 = arith.constant 0 : i32
    return %c0_i32, %c0_i32_0 : i32, i32
  }
  func.func @transform_3(%arg0: i32) -> (i32, i32, i32) {
    %c0_i32 = arith.constant 0 : i32
    %c0_i32_0 = arith.constant 0 : i32
    %c0_i32_1 = arith.constant 0 : i32
    return %arg0, %c0_i32, %c0_i32_0 : i32, i32, i32
  }
}

</mosaic_0001>

<llo_original>
// kernel: conv2d_forward.1
$region0: #{conv2d_forward.1}
  #allocation0 [shape = 'u32[]', space=smem, size = 0x4, offset = 0x4, fixed_abs, tag = 'smem constant byte address 0x4 - core index']
  #allocation1 [shape = 'u32[144,128]{1,0:T(1,128)}', space=vmem, size = 0x12000, scoped, tag = 'internal scratch']
  %s0 = inlined_call_operand.vmem [shape: bf16[2,16,128], index: 0, kind: input, shape index: {}]
  %s1 = inlined_call_operand.vmem [shape: bf16[32,16], index: 1, kind: input, shape index: {}]
  %s2 = inlined_call_operand.vmem [shape: f32[8,1], index: 2, kind: input, shape index: {}]
  %s3 = inlined_call_operand.vmem [shape: f32[2,8,128], index: 3, kind: output, shape index: {}]
  %s4 = sld [smem:[#allocation0]]
  $region45: #{conv2d_forward.1} parent=0
    _
  %s6 = ssub.s32 1, %s4
  %s7 = scalar_select 0, %s6, %s4
  loop: start=0, step=1, limit=4
  $region2: #{conv2d_forward.1} parent=0 // loop_pre_header
    _
  $region3: #{conv2d_forward.1} parent=0 // loop_header
    %s9 = sphi 0, %s13
    %p10 = scmp.ge.s32.totalorder %s9, 4
    %s19 = sphi 0, %s21
    %s22 = sphi 0, %s19
    %s23 = sphi 0, %s22
    %s39 = sphi 0, %s23
    %s43 = sphi 0, %s43
    %s45 = sphi 0, %s43
    %s46 = sphi 0, %s45
    %s60 = sphi 0, %s46
    %s64 = sphi 0, %s64
    %s66 = sphi 0, %s64
    %s67 = sphi 0, %s66
    %s81 = sphi 0, %s67
    %s87 = sphi 0, %s89
    %s90 = sphi 0, %s87
    %s91 = sphi 0, %s90
    %s107 = sphi 0, %s91
  $region4: #{conv2d_forward.1} parent=0 // loop_header_branch
    %12 = sbr.rel (%p10) target = $region8
  $region5: #{conv2d_forward.1} parent=0 // loop_body
    %s14 = ssub.s32 %s9, 1
    %s15 = ssub.s32 %s9, 2
    %s16 = sadd.s32 %s9, 1
    %s17 = ssub.s32 %s9, %s16
    %p18 = scmp.eq.s32.totalorder %s17, 0
    %s20 = sadd.s32 %s19, 1
    %s21 = scalar_select %p18, %s19, %s20
    %p24 = pneg %p18
    %p25 = scmp.eq.s32.totalorder %s9, 1
    %p26 = por %p24, %p25
    %p27 = scmp.ne.s32.totalorder %s19, %s22
    %p28 = scmp.eq.s32.totalorder %s9, 0
    %p29 = por %p27, %p28
    %p30 = scmp.ne.s32.totalorder %s19, %s22
    %p31 = scmp.eq.s32.totalorder %s14, 1
    %p32 = por %p30, %p31
    %p33 = scmp.ne.s32.totalorder %s22, %s23
    %p34 = scmp.eq.s32.totalorder %s14, 0
    %p35 = por %p33, %p34
    %p36 = scmp.ne.s32.totalorder %s22, %s23
    %p37 = scmp.eq.s32.totalorder %s15, 1
    %p38 = por %p36, %p37
    %p40 = scmp.ne.s32.totalorder %s23, %s39
    %p41 = scmp.eq.s32.totalorder %s15, 0
    %p42 = por %p40, %p41
    %s44 = sadd.s32 %s43, 1
    %p47 = scmp.eq.s32.totalorder %s9, 1
    %p48 = scmp.ne.s32.totalorder %s43, %s45
    %p49 = scmp.eq.s32.totalorder %s9, 0
    %p50 = por %p48, %p49
    %p51 = scmp.ne.s32.totalorder %s43, %s45
    %p52 = scmp.eq.s32.totalorder %s14, 1
    %p53 = por %p51, %p52
    %p54 = scmp.ne.s32.totalorder %s45, %s46
    %p55 = scmp.eq.s32.totalorder %s14, 0
    %p56 = por %p54, %p55
    %p57 = scmp.ne.s32.totalorder %s45, %s46
    %p58 = scmp.eq.s32.totalorder %s15, 1
    %p59 = por %p57, %p58
    %p61 = scmp.ne.s32.totalorder %s46, %s60
    %p62 = scmp.eq.s32.totalorder %s15, 0
    %p63 = por %p61, %p62
    %s65 = sadd.s32 %s64, 1
    %p68 = scmp.eq.s32.totalorder %s9, 1
    %p69 = scmp.ne.s32.totalorder %s64, %s66
    %p70 = scmp.eq.s32.totalorder %s9, 0
    %p71 = por %p69, %p70
    %p72 = scmp.ne.s32.totalorder %s64, %s66
    %p73 = scmp.eq.s32.totalorder %s14, 1
    %p74 = por %p72, %p73
    %p75 = scmp.ne.s32.totalorder %s66, %s67
    %p76 = scmp.eq.s32.totalorder %s14, 0
    %p77 = por %p75, %p76
    %p78 = scmp.ne.s32.totalorder %s66, %s67
    %p79 = scmp.eq.s32.totalorder %s15, 1
    %p80 = por %p78, %p79
    %p82 = scmp.ne.s32.totalorder %s67, %s81
    %p83 = scmp.eq.s32.totalorder %s15, 0
    %p84 = por %p82, %p83
    %s85 = ssub.s32 %s9, %s16
    %p86 = scmp.eq.s32.totalorder %s85, 0
    %s88 = sadd.s32 %s87, 1
    %s89 = scalar_select %p86, %s87, %s88
    %p92 = pneg %p86
    %p93 = scmp.eq.s32.totalorder %s9, 1
    %p94 = por %p92, %p93
    %p95 = scmp.ne.s32.totalorder %s87, %s90
    %p96 = scmp.eq.s32.totalorder %s9, 0
    %p97 = por %p95, %p96
    %p98 = scmp.ne.s32.totalorder %s87, %s90
    %p99 = scmp.eq.s32.totalorder %s14, 1
    %p100 = por %p98, %p99
    %p101 = scmp.ne.s32.totalorder %s90, %s91
    %p102 = scmp.eq.s32.totalorder %s14, 0
    %p103 = por %p101, %p102
    %p104 = scmp.ne.s32.totalorder %s90, %s91
    %p105 = scmp.eq.s32.totalorder %s15, 1
    %p106 = por %p104, %p105
    %p108 = scmp.ne.s32.totalorder %s91, %s107
    %p109 = scmp.eq.s32.totalorder %s15, 0
    %p110 = por %p108, %p109
    %p111 = scmp.le.s32.totalorder 1, %s9
    %p112 = scmp.lt.s32.totalorder %s9, 3
    %p113 = pnand %p111, %p112
    %p114 = pneg %p113
    // Predicated region
    $region9: #{conv2d_forward.1} parent=5 // pred_check
      _
    $region10: #{conv2d_forward.1} parent=5 // pred_check_branch
      %116 = sbr.rel (%p113) target = $region12
    $region11: #{conv2d_forward.1} parent=5 // pred_region
      %s117 = ssub.s32 %s9, 1
      // Predicated region
      $region13: #{conv2d_forward.1} parent=11 // pred_check
        %p118 = pneg %p56
      $region14: #{conv2d_forward.1} parent=11 // pred_check_branch
        %120 = sbr.rel (%p118) target = $region16
      $region15: #{conv2d_forward.1} parent=11 // pred_region
        _
      $region16: #{conv2d_forward.1} parent=11 // pred_fallthru
        _
      // Predicated region
      $region17: #{conv2d_forward.1} parent=11 // pred_check
        %p121 = pneg %p77
      $region18: #{conv2d_forward.1} parent=11 // pred_check_branch
        %123 = sbr.rel (%p121) target = $region20
      $region19: #{conv2d_forward.1} parent=11 // pred_region
        _
      $region20: #{conv2d_forward.1} parent=11 // pred_fallthru
        _
    $region12: #{conv2d_forward.1} parent=5 // pred_fallthru
      _
    %p124 = scmp.lt.s32.totalorder %s9, 2
    // Predicated region
    $region21: #{conv2d_forward.1} parent=5 // pred_check
      %p125 = pneg %p124
    $region22: #{conv2d_forward.1} parent=5 // pred_check_branch
      %127 = sbr.rel (%p125) target = $region24
    $region23: #{conv2d_forward.1} parent=5 // pred_region
      // Predicated region
      $region25: #{conv2d_forward.1} parent=23 // pred_check
        %p128 = pneg %p29
      $region26: #{conv2d_forward.1} parent=23 // pred_check_branch
        %130 = sbr.rel (%p128) target = $region28
      $region27: #{conv2d_forward.1} parent=23 // pred_region
        %p131 = scmp.lt.s32.totalorder %s9, 1
        %s132 = scalar_select %p131, %s9, 1
        %s133 = smul.addr %s132, 2
        %s134 = smul.addr %s133, 4
        %s135 = scalar_lea.vmem %s0, %s134
      $region28: #{conv2d_forward.1} parent=23 // pred_fallthru
        _
    $region24: #{conv2d_forward.1} parent=5 // pred_fallthru
      _
    %p136 = scmp.le.s32.totalorder 1, %s9
    %p137 = scmp.lt.s32.totalorder %s9, 3
    %p138 = pnand %p136, %p137
    %p139 = pneg %p138
    // Predicated region
    $region29: #{conv2d_forward.1} parent=5 // pred_check
      _
    $region30: #{conv2d_forward.1} parent=5 // pred_check_branch
      %141 = sbr.rel (%p138) target = $region32
    $region31: #{conv2d_forward.1} parent=5 // pred_region
      %s142 = ssub.s32 %s9, 1
      %p143 = scmp.lt.s32.totalorder %s14, 1
      %s144 = scalar_select %p143, %s14, 1
      %s145 = smul.addr %s144, 2
      %s146 = smul.addr %s145, 4
      %s147 = scalar_lea.vmem %s0, %s146
      %p148 = pneg %p35
      %p149 = pneg %p32
      %p150 = pneg %p56
      %p151 = pneg %p53
      %p152 = pneg %p77
      %p153 = pneg %p74
      %p154 = pneg %p103
      %p155 = pneg %p100
      %p156 = scmp.lt.s32.totalorder %s14, 1
      %s157 = scalar_select %p156, %s14, 1
      %s158 = smul.addr %s157, 8
      %s159 = scalar_lea.vmem %s3, %s158
      %p160 = scmp.lt.s32.totalorder %s14, 1
      %s161 = scalar_select %p160, %s14, 1
      %s162 = smul.addr %s161, 2
      %s163 = smul.addr %s162, 4
      %s164 = scalar_lea.vmem %s0, %s163
      %p165 = scmp.lt.s32.totalorder %s14, 1
      %s166 = scalar_select %p165, %s14, 1
      %s167 = smul.addr %s166, 8
      %s168 = scalar_lea.vmem %s3, %s167
      %v170 = vld [vmem:[%s164] sm:$0xf]
      %v171 = vld [vmem:[%s164 + $0x4] sm:$0xf]
      %v172 = vld [vmem:[%s1] sm:$0xf]
      %v173 = vld [vmem:[%s1 + $0x4] sm:$0xf]
      %v174 = vld [vmem:[%s1 + $0x8] sm:$0xf]
      %v175 = vld [vmem:[%s1 + $0xc] sm:$0xf]
      %v180 = vunpack.c.l.b16 %v172
      %v181 = vunpack.c.l.b16 %v173
      %v182 = vunpack.c.l.b16 %v174
      %v183 = vunpack.c.l.b16 %v175
      %v184 = vpack.c.b16 %v181, %v180
      %v185 = vpack.c.b16 %v183, %v182
      %v188 = vunpack.c.l.b16 %v170
      %v189 = vunpack.c.l.b16 %v171
      %v190 = vpack.c.b16 %v189, %v188
      %vm192 = vcmask 130048
      %v194 = vsel %vm192, %v184, 0
      %v197 = vsel %vm192, %v185, 0
      %199 = vmatprep.subr.bf16.mxu0 0
      %200 = vmatpush1.bf16.msra.mxu0 %v190
      %201 = vmatprep.subr.bf16.mxu0 0
      %202 = vmatpush1.bf16.msra.mxu0 0
      %203 = vmatprep.subr.bf16.mxu0 0
      %204 = vmatpush1.bf16.msra.mxu0 0
      %205 = vmatprep.subr.bf16.mxu0 0
      %206 = vmatpush1.bf16.msra.mxu0 0
      %207 = vmatprep.subr.bf16.mxu0 0
      %208 = vmatpush1.bf16.msra.mxu0 0
      %209 = vmatprep.subr.bf16.mxu0 0
      %210 = vmatpush1.bf16.msra.mxu0 0
      %211 = vmatprep.subr.bf16.mxu0 0
      %212 = vmatpush1.bf16.msra.mxu0 0
      %213 = vmatprep.subr.bf16.mxu0 0
      %214 = vmatpush1.bf16.msra.mxu0 0
      %215 = vmatprep.subr.bf16.mxu0 0
      %216 = vmatpush1.bf16.msra.mxu0 0
      %217 = vmatprep.subr.bf16.mxu0 0
      %218 = vmatpush1.bf16.msra.mxu0 0
      %219 = vmatprep.subr.bf16.mxu0 0
      %220 = vmatpush1.bf16.msra.mxu0 0
      %221 = vmatprep.subr.bf16.mxu0 0
      %222 = vmatpush1.bf16.msra.mxu0 0
      %223 = vmatprep.subr.bf16.mxu0 0
      %224 = vmatpush1.bf16.msra.mxu0 0
      %225 = vmatprep.subr.bf16.mxu0 0
      %226 = vmatpush1.bf16.msra.mxu0 0
      %227 = vmatprep.subr.bf16.mxu0 0
      %228 = vmatpush1.bf16.msra.mxu0 0
      %229 = vmatprep.subr.bf16.mxu0 0
      %230 = vmatpush1.bf16.msra.mxu0 0
      %231 = vmatprep.mubr.bf16.mxu0 0
      %232 = vmatmul.mubr.bf16.gmra.mrb[0].mxu0 %v194
      %v233 = vpop.f32.mrb[0].mxu0
      %v234 = vadd.f32 0.0, %v233
      %v235 = vpop.f32.mrb[0].mxu0
      %v236 = vpop.f32.mrb[0].mxu0
      %v237 = vadd.f32 0.0, %v236
      %v238 = vpop.f32.mrb[0].mxu0
      %239 = vmatprep.mubr.bf16.mxu0 0
      %240 = vmatmul.mubr.bf16.gmra.mrb[0].mxu0 %v197
      %v241 = vpop.f32.mrb[0].mxu0
      %v242 = vadd.f32 0.0, %v241
      %v243 = vpop.f32.mrb[0].mxu0
      %v244 = vpop.f32.mrb[0].mxu0
      %v245 = vadd.f32 0.0, %v244
      %v246 = vpop.f32.mrb[0].mxu0
      %247 = vdwg.mxu0
      %248 = vrot.lane.b32.xlu0 %v237, 127
      %v249 = vpop.permute.xlu0 %248
      %v250 = vadd.f32 %v234, %v249
      %251 = vrot.lane.b32.xlu0 %v242, 119
      %v252 = vpop.permute.xlu0 %251
      %v253 = vadd.f32 %v250, %v252
      %254 = vrot.lane.b32.xlu0 %v245, 118
      %v255 = vpop.permute.xlu0 %254
      %v256 = vadd.f32 %v253, %v255
      %v257 = vld [vmem:[%s2] sm:$0xff]
      %259 = vset.pattern.permute.xlu0 0
      %260 = vperm.xlu0 %259, %v257
      %v261 = vpop.permute.xlu0 %260
      %v263 = vadd.f32 %v256, %v261
      %264 = vst [vmem:[%s168] sm:$0xff] %v263
      %p265 = scmp.lt.s32.totalorder %s14, 1
      %s266 = scalar_select %p265, %s14, 1
      %s267 = smul.addr %s266, 8
      %s268 = scalar_lea.vmem %s3, %s267
      // Predicated region
      $region33: #{conv2d_forward.1} parent=31 // pred_check
        %p269 = pneg %p100
      $region34: #{conv2d_forward.1} parent=31 // pred_check_branch
        %271 = sbr.rel (%p269) target = $region36
      $region35: #{conv2d_forward.1} parent=31 // pred_region
        _
      $region36: #{conv2d_forward.1} parent=31 // pred_fallthru
        _
    $region32: #{conv2d_forward.1} parent=5 // pred_fallthru
      _
    %p272 = scmp.le.s32.totalorder 2, %s9
    // Predicated region
    $region37: #{conv2d_forward.1} parent=5 // pred_check
      %p273 = pneg %p272
    $region38: #{conv2d_forward.1} parent=5 // pred_check_branch
      %275 = sbr.rel (%p273) target = $region40
    $region39: #{conv2d_forward.1} parent=5 // pred_region
      %s276 = ssub.s32 %s9, 2
      // Predicated region
      $region41: #{conv2d_forward.1} parent=39 // pred_check
        %p277 = pneg %p106
      $region42: #{conv2d_forward.1} parent=39 // pred_check_branch
        %279 = sbr.rel (%p277) target = $region44
      $region43: #{conv2d_forward.1} parent=39 // pred_region
        %p280 = scmp.lt.s32.totalorder %s15, 1
        %s281 = scalar_select %p280, %s15, 1
        %s282 = smul.addr %s281, 8
        %s283 = scalar_lea.vmem %s3, %s282
      $region44: #{conv2d_forward.1} parent=39 // pred_fallthru
        _
    $region40: #{conv2d_forward.1} parent=5 // pred_fallthru
      _
  $region6: #{conv2d_forward.1} parent=0 // loop_footer
    %s13 = sadd.s32 1, %s9
  $region7: #{conv2d_forward.1} parent=0 // loop_footer_branch
    %8 = sbr.rel target = $region3
  $region8: #{conv2d_forward.1} parent=0 // loop_exit
    _

</llo_original>
